<compile_context>
chip_gen: v5e
topology: v5e:2x2
jax: 0.10.0
libtpu: 0.0.40
codegen_flags: <defaults>
</compile_context>

<pallas_src>
import jax
import jax.numpy as jnp
from jax.experimental import pallas as pl
from jax.experimental.pallas import tpu as pltpu


def _round_up(x, m):
    return (x + m - 1) // m * m


def mlp_kernel(x_ref, w1_ref, b1_ref, w2_ref, b2_ref, w3_ref, b3_ref, o_ref):
    # In-kernel cast to bf16 (saves the wrapper-side cast + pad HBM passes).
    x = x_ref[...].astype(jnp.bfloat16)

    # Layer 1: Linear(input_dim -> h1) + ReLU   (Dropout p=0.3 -> identity, eval)
    h1 = jnp.dot(x, w1_ref[...], preferred_element_type=jnp.float32)
    h1 = jnp.maximum(h1 + b1_ref[...], 0.0).astype(jnp.bfloat16)

    # Layer 2: Linear(h1 -> h2) + ReLU          (Dropout p=0.3 -> identity, eval)
    h2 = jnp.dot(h1, w2_ref[...], preferred_element_type=jnp.float32)
    h2 = jnp.maximum(h2 + b2_ref[...], 0.0)     # keep f32; head uses VPU/XLU

    # Head: Linear(h2 -> 1) as per-row dot = VPU mul + XLU lane-reduce.
    # Avoids any h2 transpose / M=1 matmul; the [tile_b, 1] store is tiny.
    head = jnp.sum(h2 * w3_ref[...], axis=-1, keepdims=True) + b3_ref[...]
    o_ref[...] = head.astype(o_ref.dtype)


def distress_classifier_forward(x, packed_params, *, tile_b=2048):
    """x: [B, input_dim] -> [B, 1] float32 logits (inference path)."""
    w1, b1, w2, b2, w3r, b3 = packed_params
    B, in_dim = x.shape
    h1_dim = w1.shape[1]
    h2_dim = w2.shape[1]

    # 128-aligned batch tile (lane-width aligned), never below 128, capped so
    # the grid has >= 2 steps when B > 128 (v7x dual-TC megacore split).
    tile_b = max(128, _round_up(min(tile_b, B), 128))
    tile_b = min(tile_b, _round_up(pl.cdiv(B, 2), 128))
    num_tiles = pl.cdiv(B, tile_b)              # ragged last tile -> partial block

    flops = 2 * B * (in_dim * h1_dim + h1_dim * h2_dim + h2_dim)
    bytes_accessed = (
        x.size * x.dtype.itemsize
        + (w1.size + w2.size) * 2
        + (b1.size + b2.size + w3r.size + b3.size) * 4
        + B * 4
    )

    # VMEM footprint is dominated by per-tile intermediates, not the weights.
    vmem_est = int(
        2 * tile_b * in_dim * (x.dtype.itemsize + 2)      # x (dbl-buffered) + bf16 copy
        + tile_b * h1_dim * (4 + 2)                       # h1 f32 + bf16
        + tile_b * h2_dim * 4                             # h2 f32
        + 2 * tile_b * 4                                  # out (dbl-buffered)
        + 2 * (in_dim * h1_dim * 2 + h1_dim * h2_dim * 2  # resident weights/biases
               + (h1_dim + h2_dim + h2_dim + 1) * 4)
    )
    compiler_kwargs = dict(dimension_semantics=("parallel",))
    if vmem_est > 16 * 1024 * 1024:             # above v5e scoped-VMEM default
        compiler_kwargs["vmem_limit_bytes"] = min(2 * vmem_est, 60 * 1024 * 1024)

    out = pl.pallas_call(
        mlp_kernel,
        out_shape=jax.ShapeDtypeStruct((B, 1), jnp.float32),
        grid=(num_tiles,),
        in_specs=[
            pl.BlockSpec((tile_b, in_dim), lambda i: (i, 0)),   # x tile (native dtype)
            pl.BlockSpec((in_dim, h1_dim), lambda i: (0, 0)),   # w1 (VMEM-resident)
            pl.BlockSpec((1, h1_dim), lambda i: (0, 0)),        # b1
            pl.BlockSpec((h1_dim, h2_dim), lambda i: (0, 0)),   # w2
            pl.BlockSpec((1, h2_dim), lambda i: (0, 0)),        # b2
            pl.BlockSpec((1, h2_dim), lambda i: (0, 0)),        # w3 (row, f32)
            pl.BlockSpec((1, 1), lambda i: (0, 0)),             # b3
        ],
        out_specs=pl.BlockSpec((tile_b, 1), lambda i: (i, 0)),
        compiler_params=pltpu.CompilerParams(**compiler_kwargs),
        cost_estimate=pl.CostEstimate(
            flops=flops, transcendentals=0, bytes_accessed=bytes_accessed),
    )(x, w1, b1, w2, b2, w3r, b3)

    return out


def init_params(key, input_dim, hidden_dims=(256, 64)):
    """f32 params in PyTorch-equivalent math, stored as [in, out]."""
    h1, h2 = hidden_dims
    k = jax.random.split(key, 6)
    w1 = jax.random.normal(k[0], (input_dim, h1), jnp.float32) * (1.0 / jnp.sqrt(input_dim))
    b1 = jax.random.normal(k[1], (1, h1), jnp.float32) * 0.01
    w2 = jax.random.normal(k[2], (h1, h2), jnp.float32) * (1.0 / jnp.sqrt(h1))
    b2 = jax.random.normal(k[3], (1, h2), jnp.float32) * 0.01
    w3 = jax.random.normal(k[4], (h2, 1), jnp.float32) * (1.0 / jnp.sqrt(h2))
    b3 = jax.random.normal(k[5], (1, 1), jnp.float32) * 0.01
    return (w1, b1, w2, b2, w3, b3)


def pack_params(params):
    """One-time repack for the kernel: bf16 matmul weights, head weight as a
    [1, h2] f32 row. Biases stay f32 (added to the f32 accumulators)."""
    w1, b1, w2, b2, w3, b3 = params
    return (
        w1.astype(jnp.bfloat16),
        b1.astype(jnp.float32),
        w2.astype(jnp.bfloat16),
        b2.astype(jnp.float32),
        w3.T.astype(jnp.float32),    # [1, h2], used on the VPU (stay f32)
        b3.astype(jnp.float32),      # [1, 1]
    )


def reference_forward(x, params):
    w1, b1, w2, b2, w3, b3 = params
    h1 = jnp.maximum(x @ w1 + b1, 0.0)
    h2 = jnp.maximum(h1 @ w2 + b2, 0.0)
    return h2 @ w3 + b3


if __name__ == "__main__":
    key = jax.random.PRNGKey(0)
    k_x, k_p = jax.random.split(key)

    B, INPUT_DIM = 200, 32                      # B not a multiple of 128 -> exercises the
                                                # ragged last tile and a 2-step grid
    x = jax.random.normal(k_x, (B, INPUT_DIM), jnp.float32)
    params = init_params(k_p, INPUT_DIM, hidden_dims=(256, 64))
    packed = pack_params(params)                # done once, outside the per-call path

    fwd = jax.jit(distress_classifier_forward, static_argnames=("tile_b",))
    out = fwd(x, packed, tile_b=128)            # grid of 2 batch tiles (128 + partial 72)
    out = jax.block_until_ready(out)

    ref = reference_forward(x, params)          # f32 reference
    assert out.shape == (B, 1), out.shape
    assert jnp.allclose(out, ref, atol=5e-2, rtol=5e-2), (
        "mismatch vs reference", float(jnp.max(jnp.abs(out - ref))))

    print("KERNEL_OK")
</pallas_src>

<mosaic_0001>
module attributes {stable_mosaic.version = 11 : i64} {
  func.func @mlp_kernel(%arg0: i32, %arg1: memref<128x32xf32, #tpu.memory_space<vmem>>, %arg2: memref<32x256xbf16, #tpu.memory_space<vmem>>, %arg3: memref<1x256xf32, #tpu.memory_space<vmem>>, %arg4: memref<256x64xbf16, #tpu.memory_space<vmem>>, %arg5: memref<1x64xf32, #tpu.memory_space<vmem>>, %arg6: memref<1x64xf32, #tpu.memory_space<vmem>>, %arg7: memref<1x1xf32, #tpu.memory_space<vmem>>, %arg8: memref<128x1xf32, #tpu.memory_space<vmem>>) attributes {dimension_semantics = [#tpu.dimension_semantics<parallel>], iteration_bounds = array<i64: 2>, scalar_prefetch = 0 : i64, scratch_operands = 0 : i64, tpu.core_type = #tpu.core_type<tc>, window_params = [{transform_indices = @transform_0, window_bounds = array<i64: 128, 32>}, {pipeline_mode = #tpu.pipeline_mode<synchronous>, transform_indices = @transform_1, window_bounds = array<i64: 32, 256>}, {pipeline_mode = #tpu.pipeline_mode<synchronous>, transform_indices = @transform_2, window_bounds = array<i64: 1, 256>}, {pipeline_mode = #tpu.pipeline_mode<synchronous>, transform_indices = @transform_3, window_bounds = array<i64: 256, 64>}, {pipeline_mode = #tpu.pipeline_mode<synchronous>, transform_indices = @transform_4, window_bounds = array<i64: 1, 64>}, {pipeline_mode = #tpu.pipeline_mode<synchronous>, transform_indices = @transform_5, window_bounds = array<i64: 1, 64>}, {pipeline_mode = #tpu.pipeline_mode<synchronous>, transform_indices = @transform_6, window_bounds = array<i64: 1, 1>}, {transform_indices = @transform_7, window_bounds = array<i64: 128, 1>}]} {
    %c0 = arith.constant 0 : index
    %c0_0 = arith.constant 0 : index
    %0 = vector.load %arg1[%c0, %c0_0] : memref<128x32xf32, #tpu.memory_space<vmem>>, vector<128x32xf32>
    %1 = arith.truncf %0 : vector<128x32xf32> to vector<128x32xbf16>
    %c0_1 = arith.constant 0 : index
    %c0_2 = arith.constant 0 : index
    %2 = vector.load %arg2[%c0_1, %c0_2] : memref<32x256xbf16, #tpu.memory_space<vmem>>, vector<32x256xbf16>
    %cst = arith.constant dense<0.000000e+00> : vector<128x256xf32>
    %3 = tpu.matmul %1, %2, %cst {dimension_numbers = #tpu.dot_dimension_numbers<[1], [0], [0], [1], [0, 0, 1, 1], [], []>} : vector<128x32xbf16>, vector<32x256xbf16>, vector<128x256xf32> -> vector<128x256xf32>
    %c0_3 = arith.constant 0 : index
    %c0_4 = arith.constant 0 : index
    %4 = vector.load %arg3[%c0_3, %c0_4] : memref<1x256xf32, #tpu.memory_space<vmem>>, vector<1x256xf32>
    %5 = vector.broadcast %4 : vector<1x256xf32> to vector<128x256xf32>
    %6 = arith.addf %3, %5 : vector<128x256xf32>
    %cst_5 = arith.constant 0.000000e+00 : f32
    %7 = vector.broadcast %cst_5 : f32 to vector<128x256xf32>
    %8 = arith.maximumf %6, %7 : vector<128x256xf32>
    %9 = arith.truncf %8 : vector<128x256xf32> to vector<128x256xbf16>
    %c0_6 = arith.constant 0 : index
    %c0_7 = arith.constant 0 : index
    %10 = vector.load %arg4[%c0_6, %c0_7] : memref<256x64xbf16, #tpu.memory_space<vmem>>, vector<256x64xbf16>
    %cst_8 = arith.constant dense<0.000000e+00> : vector<128x64xf32>
    %11 = tpu.matmul %9, %10, %cst_8 {dimension_numbers = #tpu.dot_dimension_numbers<[1], [0], [0], [1], [0, 0, 1, 1], [], []>} : vector<128x256xbf16>, vector<256x64xbf16>, vector<128x64xf32> -> vector<128x64xf32>
    %c0_9 = arith.constant 0 : index
    %c0_10 = arith.constant 0 : index
    %12 = vector.load %arg5[%c0_9, %c0_10] : memref<1x64xf32, #tpu.memory_space<vmem>>, vector<1x64xf32>
    %13 = vector.broadcast %12 : vector<1x64xf32> to vector<128x64xf32>
    %14 = arith.addf %11, %13 : vector<128x64xf32>
    %cst_11 = arith.constant 0.000000e+00 : f32
    %15 = vector.broadcast %cst_11 : f32 to vector<128x64xf32>
    %16 = arith.maximumf %14, %15 : vector<128x64xf32>
    %c0_12 = arith.constant 0 : index
    %c0_13 = arith.constant 0 : index
    %17 = vector.load %arg6[%c0_12, %c0_13] : memref<1x64xf32, #tpu.memory_space<vmem>>, vector<1x64xf32>
    %18 = vector.broadcast %17 : vector<1x64xf32> to vector<128x64xf32>
    %19 = arith.mulf %16, %18 : vector<128x64xf32>
    %cst_14 = arith.constant dense<0.000000e+00> : vector<128xf32>
    %20 = vector.multi_reduction <add>, %19, %cst_14 [1] : vector<128x64xf32> to vector<128xf32>
    %21 = vector.shape_cast %20 : vector<128xf32> to vector<128x1xf32>
    %c0_15 = arith.constant 0 : index
    %c0_16 = arith.constant 0 : index
    %22 = vector.load %arg7[%c0_15, %c0_16] : memref<1x1xf32, #tpu.memory_space<vmem>>, vector<1x1xf32>
    %23 = vector.broadcast %22 : vector<1x1xf32> to vector<128x1xf32>
    %24 = arith.addf %21, %23 : vector<128x1xf32>
    %c0_17 = arith.constant 0 : index
    %c0_18 = arith.constant 0 : index
    %25 = vector.load %arg8[%c0_17, %c0_18] : memref<128x1xf32, #tpu.memory_space<vmem>>, vector<128x1xf32>
    tpu.vector_store %arg8[%c0_17, %c0_18], %24 {strides = array<i32>} : memref<128x1xf32, #tpu.memory_space<vmem>>, vector<128x1xf32>,
    return
  }
  func.func @transform_0(%arg0: i32) -> (i32, i32) {
    %c0_i32 = arith.constant 0 : i32
    %c0_i32_0 = arith.constant 0 : i32
    return %arg0, %c0_i32 : i32, i32
  }
  func.func @transform_1(%arg0: i32) -> (i32, i32) {
    %c0_i32 = arith.constant 0 : i32
    %c0_i32_0 = arith.constant 0 : i32
    %c0_i32_1 = arith.constant 0 : i32
    return %c0_i32, %c0_i32_0 : i32, i32
  }
  func.func @transform_2(%arg0: i32) -> (i32, i32) {
    %c0_i32 = arith.constant 0 : i32
    %c0_i32_0 = arith.constant 0 : i32
    %c0_i32_1 = arith.constant 0 : i32
    return %c0_i32, %c0_i32_0 : i32, i32
  }
  func.func @transform_3(%arg0: i32) -> (i32, i32) {
    %c0_i32 = arith.constant 0 : i32
    %c0_i32_0 = arith.constant 0 : i32
    %c0_i32_1 = arith.constant 0 : i32
    return %c0_i32, %c0_i32_0 : i32, i32
  }
  func.func @transform_4(%arg0: i32) -> (i32, i32) {
    %c0_i32 = arith.constant 0 : i32
    %c0_i32_0 = arith.constant 0 : i32
    %c0_i32_1 = arith.constant 0 : i32
    return %c0_i32, %c0_i32_0 : i32, i32
  }
  func.func @transform_5(%arg0: i32) -> (i32, i32) {
    %c0_i32 = arith.constant 0 : i32
    %c0_i32_0 = arith.constant 0 : i32
    %c0_i32_1 = arith.constant 0 : i32
    return %c0_i32, %c0_i32_0 : i32, i32
  }
  func.func @transform_6(%arg0: i32) -> (i32, i32) {
    %c0_i32 = arith.constant 0 : i32
    %c0_i32_0 = arith.constant 0 : i32
    %c0_i32_1 = arith.constant 0 : i32
    return %c0_i32, %c0_i32_0 : i32, i32
  }
  func.func @transform_7(%arg0: i32) -> (i32, i32) {
    %c0_i32 = arith.constant 0 : i32
    %c0_i32_0 = arith.constant 0 : i32
    return %arg0, %c0_i32 : i32, i32
  }
}

</mosaic_0001>

<llo_original>
// kernel: distress_classifier_forward.1
$region0: #{distress_classifier_forward.1}
  #allocation0 [shape = 'u32[]', space=smem, size = 0x4, offset = 0x4, fixed_abs, tag = 'smem constant byte address 0x4 - core index']
  #allocation1 [shape = 'u32[72,128]{1,0:T(1,128)}', space=vmem, size = 0x9000, scoped, tag = 'internal scratch']
  #allocation2 [shape = 'f32[1,1]{1,0:T(1,128)S(1)}', space=vmem, size = 0x200, scoped, tag = 'scoped memory for distress_classifier_forward.1']
  %s0 = inlined_call_operand.vmem [shape: f32[200,32], index: 0, kind: input, shape index: {}]
  %s1 = inlined_call_operand.vmem [shape: bf16[32,256], index: 1, kind: input, shape index: {}]
  %s2 = inlined_call_operand.vmem [shape: f32[1,256], index: 2, kind: input, shape index: {}]
  %s3 = inlined_call_operand.vmem [shape: bf16[256,64], index: 3, kind: input, shape index: {}]
  %s4 = inlined_call_operand.vmem [shape: f32[1,64], index: 4, kind: input, shape index: {}]
  %s5 = inlined_call_operand.vmem [shape: f32[1,64], index: 5, kind: input, shape index: {}]
  %s6 = inlined_call_operand.<no memory space> [shape: f32[1,1], index: 6, kind: input, shape index: {}]
  %s7 = inlined_call_operand.vmem [shape: f32[200,1], index: 7, kind: output, shape index: {}]
  %s8 = sld [smem:[#allocation0]]
  $region109: #{distress_classifier_forward.1} parent=0
    _
  %s10 = ssub.s32 1, %s8
  %s11 = scalar_select 0, %s10, %s8
  %v12 = vstv %s6
  %13 = vst [vmem:[#allocation2] sm:$0x1] %v12
  $region1: #{distress_classifier_forward.1} parent=0
    #allocation3 [shape = 'u8[131072]{0}', space=vmem, size = 0x20000, scoped, tag = 'output window, operand 0']
    loop: start=0, step=1, limit=4
    $region2: #{distress_classifier_forward.1} parent=1 // loop_pre_header
      _
    $region3: #{distress_classifier_forward.1} parent=1 // loop_header
      %s15 = sphi 0, %s19
      %p16 = scmp.ge.s32.totalorder %s15, 4
      %s25 = sphi 0, %s27
      %s28 = sphi 0, %s25
      %s29 = sphi 0, %s28
      %s45 = sphi 0, %s29
      %s49 = sphi 0, %s49
      %s51 = sphi 0, %s49
      %s52 = sphi 0, %s51
      %s66 = sphi 0, %s52
      %s70 = sphi 0, %s70
      %s72 = sphi 0, %s70
      %s73 = sphi 0, %s72
      %s87 = sphi 0, %s73
      %s91 = sphi 0, %s91
      %s93 = sphi 0, %s91
      %s94 = sphi 0, %s93
      %s108 = sphi 0, %s94
      %s112 = sphi 0, %s112
      %s114 = sphi 0, %s112
      %s115 = sphi 0, %s114
      %s129 = sphi 0, %s115
      %s133 = sphi 0, %s133
      %s135 = sphi 0, %s133
      %s136 = sphi 0, %s135
      %s150 = sphi 0, %s136
      %s154 = sphi 0, %s154
      %s156 = sphi 0, %s154
      %s157 = sphi 0, %s156
      %s171 = sphi 0, %s157
      %s177 = sphi 0, %s179
      %s180 = sphi 0, %s177
      %s181 = sphi 0, %s180
      %s197 = sphi 0, %s181
    $region4: #{distress_classifier_forward.1} parent=1 // loop_header_branch
      %18 = sbr.rel (%p16) target = $region8
    $region5: #{distress_classifier_forward.1} parent=1 // loop_body
      %s20 = ssub.s32 %s15, 1
      %s21 = ssub.s32 %s15, 2
      %s22 = sadd.s32 %s15, 1
      %s23 = ssub.s32 %s15, %s22
      %p24 = scmp.eq.s32.totalorder %s23, 0
      %s26 = sadd.s32 %s25, 1
      %s27 = scalar_select %p24, %s25, %s26
      %p30 = pneg %p24
      %p31 = scmp.eq.s32.totalorder %s15, 1
      %p32 = por %p30, %p31
      %p33 = scmp.ne.s32.totalorder %s25, %s28
      %p34 = scmp.eq.s32.totalorder %s15, 0
      %p35 = por %p33, %p34
      %p36 = scmp.ne.s32.totalorder %s25, %s28
      %p37 = scmp.eq.s32.totalorder %s20, 1
      %p38 = por %p36, %p37
      %p39 = scmp.ne.s32.totalorder %s28, %s29
      %p40 = scmp.eq.s32.totalorder %s20, 0
      %p41 = por %p39, %p40
      %p42 = scmp.ne.s32.totalorder %s28, %s29
      %p43 = scmp.eq.s32.totalorder %s21, 1
      %p44 = por %p42, %p43
      %p46 = scmp.ne.s32.totalorder %s29, %s45
      %p47 = scmp.eq.s32.totalorder %s21, 0
      %p48 = por %p46, %p47
      %s50 = sadd.s32 %s49, 1
      %p53 = scmp.eq.s32.totalorder %s15, 1
      %p54 = scmp.ne.s32.totalorder %s49, %s51
      %p55 = scmp.eq.s32.totalorder %s15, 0
      %p56 = por %p54, %p55
      %p57 = scmp.ne.s32.totalorder %s49, %s51
      %p58 = scmp.eq.s32.totalorder %s20, 1
      %p59 = por %p57, %p58
      %p60 = scmp.ne.s32.totalorder %s51, %s52
      %p61 = scmp.eq.s32.totalorder %s20, 0
      %p62 = por %p60, %p61
      %p63 = scmp.ne.s32.totalorder %s51, %s52
      %p64 = scmp.eq.s32.totalorder %s21, 1
      %p65 = por %p63, %p64
      %p67 = scmp.ne.s32.totalorder %s52, %s66
      %p68 = scmp.eq.s32.totalorder %s21, 0
      %p69 = por %p67, %p68
      %s71 = sadd.s32 %s70, 1
      %p74 = scmp.eq.s32.totalorder %s15, 1
      %p75 = scmp.ne.s32.totalorder %s70, %s72
      %p76 = scmp.eq.s32.totalorder %s15, 0
      %p77 = por %p75, %p76
      %p78 = scmp.ne.s32.totalorder %s70, %s72
      %p79 = scmp.eq.s32.totalorder %s20, 1
      %p80 = por %p78, %p79
      %p81 = scmp.ne.s32.totalorder %s72, %s73
      %p82 = scmp.eq.s32.totalorder %s20, 0
      %p83 = por %p81, %p82
      %p84 = scmp.ne.s32.totalorder %s72, %s73
      %p85 = scmp.eq.s32.totalorder %s21, 1
      %p86 = por %p84, %p85
      %p88 = scmp.ne.s32.totalorder %s73, %s87
      %p89 = scmp.eq.s32.totalorder %s21, 0
      %p90 = por %p88, %p89
      %s92 = sadd.s32 %s91, 1
      %p95 = scmp.eq.s32.totalorder %s15, 1
      %p96 = scmp.ne.s32.totalorder %s91, %s93
      %p97 = scmp.eq.s32.totalorder %s15, 0
      %p98 = por %p96, %p97
      %p99 = scmp.ne.s32.totalorder %s91, %s93
      %p100 = scmp.eq.s32.totalorder %s20, 1
      %p101 = por %p99, %p100
      %p102 = scmp.ne.s32.totalorder %s93, %s94
      %p103 = scmp.eq.s32.totalorder %s20, 0
      %p104 = por %p102, %p103
      %p105 = scmp.ne.s32.totalorder %s93, %s94
      %p106 = scmp.eq.s32.totalorder %s21, 1
      %p107 = por %p105, %p106
      %p109 = scmp.ne.s32.totalorder %s94, %s108
      %p110 = scmp.eq.s32.totalorder %s21, 0
      %p111 = por %p109, %p110
      %s113 = sadd.s32 %s112, 1
      %p116 = scmp.eq.s32.totalorder %s15, 1
      %p117 = scmp.ne.s32.totalorder %s112, %s114
      %p118 = scmp.eq.s32.totalorder %s15, 0
      %p119 = por %p117, %p118
      %p120 = scmp.ne.s32.totalorder %s112, %s114
      %p121 = scmp.eq.s32.totalorder %s20, 1
      %p122 = por %p120, %p121
      %p123 = scmp.ne.s32.totalorder %s114, %s115
      %p124 = scmp.eq.s32.totalorder %s20, 0
      %p125 = por %p123, %p124
      %p126 = scmp.ne.s32.totalorder %s114, %s115
      %p127 = scmp.eq.s32.totalorder %s21, 1
      %p128 = por %p126, %p127
      %p130 = scmp.ne.s32.totalorder %s115, %s129
      %p131 = scmp.eq.s32.totalorder %s21, 0
      %p132 = por %p130, %p131
      %s134 = sadd.s32 %s133, 1
      %p137 = scmp.eq.s32.totalorder %s15, 1
      %p138 = scmp.ne.s32.totalorder %s133, %s135
      %p139 = scmp.eq.s32.totalorder %s15, 0
      %p140 = por %p138, %p139
      %p141 = scmp.ne.s32.totalorder %s133, %s135
      %p142 = scmp.eq.s32.totalorder %s20, 1
      %p143 = por %p141, %p142
      %p144 = scmp.ne.s32.totalorder %s135, %s136
      %p145 = scmp.eq.s32.totalorder %s20, 0
      %p146 = por %p144, %p145
      %p147 = scmp.ne.s32.totalorder %s135, %s136
      %p148 = scmp.eq.s32.totalorder %s21, 1
      %p149 = por %p147, %p148
      %p151 = scmp.ne.s32.totalorder %s136, %s150
      %p152 = scmp.eq.s32.totalorder %s21, 0
      %p153 = por %p151, %p152
      %s155 = sadd.s32 %s154, 1
      %p158 = scmp.eq.s32.totalorder %s15, 1
      %p159 = scmp.ne.s32.totalorder %s154, %s156
      %p160 = scmp.eq.s32.totalorder %s15, 0
      %p161 = por %p159, %p160
      %p162 = scmp.ne.s32.totalorder %s154, %s156
      %p163 = scmp.eq.s32.totalorder %s20, 1
      %p164 = por %p162, %p163
      %p165 = scmp.ne.s32.totalorder %s156, %s157
      %p166 = scmp.eq.s32.totalorder %s20, 0
      %p167 = por %p165, %p166
      %p168 = scmp.ne.s32.totalorder %s156, %s157
      %p169 = scmp.eq.s32.totalorder %s21, 1
      %p170 = por %p168, %p169
      %p172 = scmp.ne.s32.totalorder %s157, %s171
      %p173 = scmp.eq.s32.totalorder %s21, 0
      %p174 = por %p172, %p173
      %s175 = ssub.s32 %s15, %s22
      %p176 = scmp.eq.s32.totalorder %s175, 0
      %s178 = sadd.s32 %s177, 1
      %s179 = scalar_select %p176, %s177, %s178
      %p182 = pneg %p176
      %p183 = scmp.eq.s32.totalorder %s15, 1
      %p184 = por %p182, %p183
      %p185 = scmp.ne.s32.totalorder %s177, %s180
      %p186 = scmp.eq.s32.totalorder %s15, 0
      %p187 = por %p185, %p186
      %p188 = scmp.ne.s32.totalorder %s177, %s180
      %p189 = scmp.eq.s32.totalorder %s20, 1
      %p190 = por %p188, %p189
      %p191 = scmp.ne.s32.totalorder %s180, %s181
      %p192 = scmp.eq.s32.totalorder %s20, 0
      %p193 = por %p191, %p192
      %p194 = scmp.ne.s32.totalorder %s180, %s181
      %p195 = scmp.eq.s32.totalorder %s21, 1
      %p196 = por %p194, %p195
      %p198 = scmp.ne.s32.totalorder %s181, %s197
      %p199 = scmp.eq.s32.totalorder %s21, 0
      %p200 = por %p198, %p199
      %p201 = scmp.le.s32.totalorder 1, %s15
      %p202 = scmp.lt.s32.totalorder %s15, 3
      %p203 = pnand %p201, %p202
      %p204 = pneg %p203
      // Predicated region
      $region9: #{distress_classifier_forward.1} parent=5 // pred_check
        _
      $region10: #{distress_classifier_forward.1} parent=5 // pred_check_branch
        %206 = sbr.rel (%p203) target = $region12
      $region11: #{distress_classifier_forward.1} parent=5 // pred_region
        %s207 = ssub.s32 %s15, 1
        // Predicated region
        $region13: #{distress_classifier_forward.1} parent=11 // pred_check
          %p208 = pneg %p62
        $region14: #{distress_classifier_forward.1} parent=11 // pred_check_branch
          %210 = sbr.rel (%p208) target = $region16
        $region15: #{distress_classifier_forward.1} parent=11 // pred_region
          _
        $region16: #{distress_classifier_forward.1} parent=11 // pred_fallthru
          _
        // Predicated region
        $region17: #{distress_classifier_forward.1} parent=11 // pred_check
          %p211 = pneg %p83
        $region18: #{distress_classifier_forward.1} parent=11 // pred_check_branch
          %213 = sbr.rel (%p211) target = $region20
        $region19: #{distress_classifier_forward.1} parent=11 // pred_region
          _
        $region20: #{distress_classifier_forward.1} parent=11 // pred_fallthru
          _
        // Predicated region
        $region21: #{distress_classifier_forward.1} parent=11 // pred_check
          %p214 = pneg %p104
        $region22: #{distress_classifier_forward.1} parent=11 // pred_check_branch
          %216 = sbr.rel (%p214) target = $region24
        $region23: #{distress_classifier_forward.1} parent=11 // pred_region
          _
        $region24: #{distress_classifier_forward.1} parent=11 // pred_fallthru
          _
        // Predicated region
        $region25: #{distress_classifier_forward.1} parent=11 // pred_check
          %p217 = pneg %p125
        $region26: #{distress_classifier_forward.1} parent=11 // pred_check_branch
          %219 = sbr.rel (%p217) target = $region28
        $region27: #{distress_classifier_forward.1} parent=11 // pred_region
          _
        $region28: #{distress_classifier_forward.1} parent=11 // pred_fallthru
          _
        // Predicated region
        $region29: #{distress_classifier_forward.1} parent=11 // pred_check
          %p220 = pneg %p146
        $region30: #{distress_classifier_forward.1} parent=11 // pred_check_branch
          %222 = sbr.rel (%p220) target = $region32
        $region31: #{distress_classifier_forward.1} parent=11 // pred_region
          _
        $region32: #{distress_classifier_forward.1} parent=11 // pred_fallthru
          _
        // Predicated region
        $region33: #{distress_classifier_forward.1} parent=11 // pred_check
          %p223 = pneg %p167
        $region34: #{distress_classifier_forward.1} parent=11 // pred_check_branch
          %225 = sbr.rel (%p223) target = $region36
        $region35: #{distress_classifier_forward.1} parent=11 // pred_region
          _
        $region36: #{distress_classifier_forward.1} parent=11 // pred_fallthru
          _
      $region12: #{distress_classifier_forward.1} parent=5 // pred_fallthru
        _
      %p226 = scmp.lt.s32.totalorder %s15, 2
      // Predicated region
      $region37: #{distress_classifier_forward.1} parent=5 // pred_check
        %p227 = pneg %p226
      $region38: #{distress_classifier_forward.1} parent=5 // pred_check_branch
        %229 = sbr.rel (%p227) target = $region40
      $region39: #{distress_classifier_forward.1} parent=5 // pred_region
        // Predicated region
        $region41: #{distress_classifier_forward.1} parent=39 // pred_check
          %p230 = pneg %p35
        $region42: #{distress_classifier_forward.1} parent=39 // pred_check_branch
          %232 = sbr.rel (%p230) target = $region44
        $region43: #{distress_classifier_forward.1} parent=39 // pred_region
          %s233 = smul.u32 16, %s15
          %s234 = ssub.s32 25, %s233
          %p235 = scmp.lt.s32.totalorder %s234, 16
          %s236 = scalar_select %p235, %s234, 16
          %s237 = smul.u32 8, %s236
          %p238 = scmp.lt.s32.totalorder %s233, 24
          %s239 = scalar_select %p238, %s233, 24
          %s240 = smul.addr %s239, 8
          %s241 = scalar_lea.vmem %s0, %s240
          %s242 = smul.u32 16, %s15
          %s243 = ssub.s32 25, %s242
          %p244 = scmp.lt.s32.totalorder %s243, 16
          %s245 = scalar_select %p244, %s243, 16
          %s246 = smul.u32 8, %s245
        $region44: #{distress_classifier_forward.1} parent=39 // pred_fallthru
          _
      $region40: #{distress_classifier_forward.1} parent=5 // pred_fallthru
        _
      %p247 = scmp.le.s32.totalorder 1, %s15
      %p248 = scmp.lt.s32.totalorder %s15, 3
      %p249 = pnand %p247, %p248
      %p250 = pneg %p249
      // Predicated region
      $region45: #{distress_classifier_forward.1} parent=5 // pred_check
        _
      $region46: #{distress_classifier_forward.1} parent=5 // pred_check_branch
        %252 = sbr.rel (%p249) target = $region48
      $region47: #{distress_classifier_forward.1} parent=5 // pred_region
        %s253 = ssub.s32 %s15, 1
        %s254 = smul.u32 16, %s20
        %s255 = ssub.s32 25, %s254
        %p256 = scmp.lt.s32.totalorder %s255, 16
        %s257 = scalar_select %p256, %s255, 16
        %s258 = smul.u32 8, %s257
        %p259 = scmp.lt.s32.totalorder %s254, 24
        %s260 = scalar_select %p259, %s254, 24
        %s261 = smul.addr %s260, 8
        %s262 = scalar_lea.vmem %s0, %s261
        %p263 = pneg %p41
        %p264 = pneg %p38
        %p265 = pneg %p62
        %p266 = pneg %p59
        %p267 = pneg %p83
        %p268 = pneg %p80
        %p269 = pneg %p104
        %p270 = pneg %p101
        %p271 = pneg %p125
        %p272 = pneg %p122
        %p273 = pneg %p146
        %p274 = pneg %p143
        %p275 = pneg %p167
        %p276 = pneg %p164
        %p277 = pneg %p193
        %p278 = pneg %p190
        %s279 = sand.u32 %s180, 1
        %s280 = sand.u32 %s180, 1
        %s281 = smul.addr %s280, 128
        %s282 = scalar_lea.vmem [#allocation3], %s281
        %s283 = smul.u32 16, %s20
        %s284 = ssub.s32 25, %s283
        %p285 = scmp.lt.s32.totalorder %s284, 16
        %s286 = scalar_select %p285, %s284, 16
        %s287 = smul.u32 8, %s286
        %p288 = scmp.lt.s32.totalorder %s283, 24
        %s289 = scalar_select %p288, %s283, 24
        %s290 = smul.addr %s289, 8
        %s291 = scalar_lea.vmem %s0, %s290
        %s292 = smul.u32 16, %s20
        %s293 = ssub.s32 25, %s292
        %p294 = scmp.lt.s32.totalorder %s293, 16
        %s295 = scalar_select %p294, %s293, 16
        %s296 = smul.u32 8, %s295
        %s297 = smul.u32 16, %s20
        %s298 = ssub.s32 25, %s297
        %p299 = scmp.lt.s32.totalorder %s298, 16
        %s300 = scalar_select %p299, %s298, 16
        %s301 = smul.u32 8, %s300
        %v303 = vld [vmem:[%s291] sm:$0xff]
        %v304 = vld [vmem:[%s291 + $0x8] sm:$0xff]
        %v305 = vld [vmem:[%s291 + $0x10] sm:$0xff]
        %v306 = vld [vmem:[%s291 + $0x18] sm:$0xff]
        %v307 = vld [vmem:[%s291 + $0x20] sm:$0xff]
        %v308 = vld [vmem:[%s291 + $0x28] sm:$0xff]
        %v309 = vld [vmem:[%s291 + $0x30] sm:$0xff]
        %v310 = vld [vmem:[%s291 + $0x38] sm:$0xff]
        %v311 = vld [vmem:[%s291 + $0x40] sm:$0xff]
        %v312 = vld [vmem:[%s291 + $0x48] sm:$0xff]
        %v313 = vld [vmem:[%s291 + $0x50] sm:$0xff]
        %v314 = vld [vmem:[%s291 + $0x58] sm:$0xff]
        %v315 = vld [vmem:[%s291 + $0x60] sm:$0xff]
        %v316 = vld [vmem:[%s291 + $0x68] sm:$0xff]
        %v317 = vld [vmem:[%s291 + $0x70] sm:$0xff]
        %v318 = vld [vmem:[%s291 + $0x78] sm:$0xff]
        %v319 = vpack.c.bf16 %v304, %v303
        %v320 = vpack.c.bf16 %v306, %v305
        %v321 = vpack.c.bf16 %v308, %v307
        %v322 = vpack.c.bf16 %v310, %v309
        %v323 = vpack.c.bf16 %v312, %v311
        %v324 = vpack.c.bf16 %v314, %v313
        %v325 = vpack.c.bf16 %v316, %v315
        %v326 = vpack.c.bf16 %v318, %v317
        %v327 = vld [vmem:[%s1] sm:$0xff]
        %v328 = vld [vmem:[%s1 + $0x8] sm:$0xff]
        %v329 = vld [vmem:[%s1 + $0x10] sm:$0xff]
        %v330 = vld [vmem:[%s1 + $0x18] sm:$0xff]
        %v331 = vld [vmem:[%s2] sm:$0x3]
        %v333 = vperm.slane %v331, 0
        %v334 = vperm.slane %v331, 1
        %v341 = vunpack.c.l.b16 %v327
        %v342 = vunpack.c.h.b16 %v327
        %v343 = vunpack.c.l.b16 %v328
        %v344 = vunpack.c.h.b16 %v328
        %v345 = vunpack.c.l.b16 %v329
        %v346 = vunpack.c.h.b16 %v329
        %v347 = vunpack.c.l.b16 %v330
        %v348 = vunpack.c.h.b16 %v330
        %v349 = vpack.c.b16 %v343, %v341
        %v350 = vpack.c.b16 %v344, %v342
        %v351 = vpack.c.b16 %v347, %v345
        %v352 = vpack.c.b16 %v348, %v346
        %vm357 = vcmask 261120
        %v359 = vsel %vm357, %v319, 0
        %v362 = vsel %vm357, %v320, 0
        %v365 = vsel %vm357, %v321, 0
        %v368 = vsel %vm357, %v322, 0
        %v371 = vsel %vm357, %v323, 0
        %v374 = vsel %vm357, %v324, 0
        %v377 = vsel %vm357, %v325, 0
        %v380 = vsel %vm357, %v326, 0
        %382 = vmatpush.bf16.msra.mxu0 0
        %383 = vmatpush.bf16.msra.mxu0 0
        %384 = vmatpush.bf16.msra.mxu0 0
        %385 = vmatpush.bf16.msra.mxu0 0
        %386 = vmatpush.bf16.msra.mxu0 0
        %387 = vmatpush.bf16.msra.mxu0 0
        %388 = vmatpush.bf16.msra.mxu0 %v351
        %389 = vmatpush.bf16.msra.mxu0 %v349
        %390 = vmatmul.bf16.gmra.mxu0 %v359
        %v391 = vpop.f32.mrf.mxu0
        %v392 = vadd.f32 %v333, %v391
        %v393 = vpop.f32.mrf.mxu0
        %v394 = vadd.f32 %v333, %v393
        %395 = vmatmul.bf16.gmra.mxu0 %v362
        %v396 = vpop.f32.mrf.mxu0
        %v397 = vadd.f32 %v333, %v396
        %v398 = vpop.f32.mrf.mxu0
        %v399 = vadd.f32 %v333, %v398
        %400 = vmatmul.bf16.gmra.mxu0 %v365
        %v401 = vpop.f32.mrf.mxu0
        %v402 = vadd.f32 %v333, %v401
        %v403 = vpop.f32.mrf.mxu0
        %v404 = vadd.f32 %v333, %v403
        %405 = vmatmul.bf16.gmra.mxu0 %v368
        %v406 = vpop.f32.mrf.mxu0
        %v407 = vadd.f32 %v333, %v406
        %v408 = vpop.f32.mrf.mxu0
        %v409 = vadd.f32 %v333, %v408
        %410 = vmatmul.bf16.gmra.mxu0 %v371
        %v411 = vpop.f32.mrf.mxu0
        %v412 = vadd.f32 %v333, %v411
        %v413 = vpop.f32.mrf.mxu0
        %v414 = vadd.f32 %v333, %v413
        %415 = vmatmul.bf16.gmra.mxu0 %v374
        %v416 = vpop.f32.mrf.mxu0
        %v417 = vadd.f32 %v333, %v416
        %v418 = vpop.f32.mrf.mxu0
        %v419 = vadd.f32 %v333, %v418
        %420 = vmatmul.bf16.gmra.mxu0 %v377
        %v421 = vpop.f32.mrf.mxu0
        %v422 = vadd.f32 %v333, %v421
        %v423 = vpop.f32.mrf.mxu0
        %v424 = vadd.f32 %v333, %v423
        %425 = vmatmul.bf16.gmra.mxu0 %v380
        %v426 = vpop.f32.mrf.mxu0
        %v427 = vadd.f32 %v333, %v426
        %v428 = vpop.f32.mrf.mxu0
        %v429 = vadd.f32 %v333, %v428
        %430 = vdwg.mxu0
        %431 = vmatpush.bf16.msra.mxu0 0
        %432 = vmatpush.bf16.msra.mxu0 0
        %433 = vmatpush.bf16.msra.mxu0 0
        %434 = vmatpush.bf16.msra.mxu0 0
        %435 = vmatpush.bf16.msra.mxu0 0
        %436 = vmatpush.bf16.msra.mxu0 0
        %437 = vmatpush.bf16.msra.mxu0 %v352
        %438 = vmatpush.bf16.msra.mxu0 %v350
        %439 = vmatmul.bf16.gmra.mxu0 %v359
        %v440 = vpop.f32.mrf.mxu0
        %v441 = vadd.f32 %v334, %v440
        %v442 = vpop.f32.mrf.mxu0
        %v443 = vadd.f32 %v334, %v442
        %444 = vmatmul.bf16.gmra.mxu0 %v362
        %v445 = vpop.f32.mrf.mxu0
        %v446 = vadd.f32 %v334, %v445
        %v447 = vpop.f32.mrf.mxu0
        %v448 = vadd.f32 %v334, %v447
        %449 = vmatmul.bf16.gmra.mxu0 %v365
        %v450 = vpop.f32.mrf.mxu0
        %v451 = vadd.f32 %v334, %v450
        %v452 = vpop.f32.mrf.mxu0
        %v453 = vadd.f32 %v334, %v452
        %454 = vmatmul.bf16.gmra.mxu0 %v368
        %v455 = vpop.f32.mrf.mxu0
        %v456 = vadd.f32 %v334, %v455
        %v457 = vpop.f32.mrf.mxu0
        %v458 = vadd.f32 %v334, %v457
        %459 = vmatmul.bf16.gmra.mxu0 %v371
        %v460 = vpop.f32.mrf.mxu0
        %v461 = vadd.f32 %v334, %v460
        %v462 = vpop.f32.mrf.mxu0
        %v463 = vadd.f32 %v334, %v462
        %464 = vmatmul.bf16.gmra.mxu0 %v374
        %v465 = vpop.f32.mrf.mxu0
        %v466 = vadd.f32 %v334, %v465
        %v467 = vpop.f32.mrf.mxu0
        %v468 = vadd.f32 %v334, %v467
        %469 = vmatmul.bf16.gmra.mxu0 %v377
        %v470 = vpop.f32.mrf.mxu0
        %v471 = vadd.f32 %v334, %v470
        %v472 = vpop.f32.mrf.mxu0
        %v473 = vadd.f32 %v334, %v472
        %474 = vmatmul.bf16.gmra.mxu0 %v380
        %v475 = vpop.f32.mrf.mxu0
        %v476 = vadd.f32 %v334, %v475
        %v477 = vpop.f32.mrf.mxu0
        %v478 = vadd.f32 %v334, %v477
        %479 = vdwg.mxu0
        %v480 = vmax.f32 %v392, 0.0
        %v481 = vmax.f32 %v441, 0.0
        %v482 = vmax.f32 %v394, 0.0
        %v483 = vmax.f32 %v443, 0.0
        %v484 = vmax.f32 %v397, 0.0
        %v485 = vmax.f32 %v446, 0.0
        %v486 = vmax.f32 %v399, 0.0
        %v487 = vmax.f32 %v448, 0.0
        %v488 = vmax.f32 %v402, 0.0
        %v489 = vmax.f32 %v451, 0.0
        %v490 = vmax.f32 %v404, 0.0
        %v491 = vmax.f32 %v453, 0.0
        %v492 = vmax.f32 %v407, 0.0
        %v493 = vmax.f32 %v456, 0.0
        %v494 = vmax.f32 %v409, 0.0
        %v495 = vmax.f32 %v458, 0.0
        %v496 = vmax.f32 %v412, 0.0
        %v497 = vmax.f32 %v461, 0.0
        %v498 = vmax.f32 %v414, 0.0
        %v499 = vmax.f32 %v463, 0.0
        %v500 = vmax.f32 %v417, 0.0
        %v501 = vmax.f32 %v466, 0.0
        %v502 = vmax.f32 %v419, 0.0
        %v503 = vmax.f32 %v468, 0.0
        %v504 = vmax.f32 %v422, 0.0
        %v505 = vmax.f32 %v471, 0.0
        %v506 = vmax.f32 %v424, 0.0
        %v507 = vmax.f32 %v473, 0.0
        %v508 = vmax.f32 %v427, 0.0
        %v509 = vmax.f32 %v476, 0.0
        %v510 = vmax.f32 %v429, 0.0
        %v511 = vmax.f32 %v478, 0.0
        %v512 = vpack.c.bf16 %v482, %v480
        %v513 = vpack.c.bf16 %v483, %v481
        %v514 = vpack.c.bf16 %v486, %v484
        %v515 = vpack.c.bf16 %v487, %v485
        %v516 = vpack.c.bf16 %v490, %v488
        %v517 = vpack.c.bf16 %v491, %v489
        %v518 = vpack.c.bf16 %v494, %v492
        %v519 = vpack.c.bf16 %v495, %v493
        %v520 = vpack.c.bf16 %v498, %v496
        %v521 = vpack.c.bf16 %v499, %v497
        %v522 = vpack.c.bf16 %v502, %v500
        %v523 = vpack.c.bf16 %v503, %v501
        %v524 = vpack.c.bf16 %v506, %v504
        %v525 = vpack.c.bf16 %v507, %v505
        %v526 = vpack.c.bf16 %v510, %v508
        %v527 = vpack.c.bf16 %v511, %v509
        %v528 = vld [vmem:[%s3] sm:$0xf]
        %v529 = vld [vmem:[%s3 + $0x4] sm:$0xf]
        %v530 = vld [vmem:[%s3 + $0x8] sm:$0xf]
        %v531 = vld [vmem:[%s3 + $0xc] sm:$0xf]
        %v532 = vld [vmem:[%s3 + $0x10] sm:$0xf]
        %v533 = vld [vmem:[%s3 + $0x14] sm:$0xf]
        %v534 = vld [vmem:[%s3 + $0x18] sm:$0xf]
        %v535 = vld [vmem:[%s3 + $0x1c] sm:$0xf]
        %v536 = vld [vmem:[%s3 + $0x20] sm:$0xf]
        %v537 = vld [vmem:[%s3 + $0x24] sm:$0xf]
        %v538 = vld [vmem:[%s3 + $0x28] sm:$0xf]
        %v539 = vld [vmem:[%s3 + $0x2c] sm:$0xf]
        %v540 = vld [vmem:[%s3 + $0x30] sm:$0xf]
        %v541 = vld [vmem:[%s3 + $0x34] sm:$0xf]
        %v542 = vld [vmem:[%s3 + $0x38] sm:$0xf]
        %v543 = vld [vmem:[%s3 + $0x3c] sm:$0xf]
        %v544 = vld [vmem:[%s3 + $0x40] sm:$0xf]
        %v545 = vld [vmem:[%s3 + $0x44] sm:$0xf]
        %v546 = vld [vmem:[%s3 + $0x48] sm:$0xf]
        %v547 = vld [vmem:[%s3 + $0x4c] sm:$0xf]
        %v548 = vld [vmem:[%s3 + $0x50] sm:$0xf]
        %v549 = vld [vmem:[%s3 + $0x54] sm:$0xf]
        %v550 = vld [vmem:[%s3 + $0x58] sm:$0xf]
        %v551 = vld [vmem:[%s3 + $0x5c] sm:$0xf]
        %v552 = vld [vmem:[%s3 + $0x60] sm:$0xf]
        %v553 = vld [vmem:[%s3 + $0x64] sm:$0xf]
        %v554 = vld [vmem:[%s3 + $0x68] sm:$0xf]
        %v555 = vld [vmem:[%s3 + $0x6c] sm:$0xf]
        %v556 = vld [vmem:[%s3 + $0x70] sm:$0xf]
        %v557 = vld [vmem:[%s3 + $0x74] sm:$0xf]
        %v558 = vld [vmem:[%s3 + $0x78] sm:$0xf]
        %v559 = vld [vmem:[%s3 + $0x7c] sm:$0xf]
        %v560 = vld [vmem:[%s4] sm:$0x1]
        %v562 = vperm.slane %v560, 0
        %v596 = vunpack.c.l.b16 %v528
        %v597 = vunpack.c.l.b16 %v529
        %v598 = vunpack.c.l.b16 %v530
        %v599 = vunpack.c.l.b16 %v531
        %v600 = vunpack.c.l.b16 %v532
        %v601 = vunpack.c.l.b16 %v533
        %v602 = vunpack.c.l.b16 %v534
        %v603 = vunpack.c.l.b16 %v535
        %v604 = vunpack.c.l.b16 %v536
        %v605 = vunpack.c.l.b16 %v537
        %v606 = vunpack.c.l.b16 %v538
        %v607 = vunpack.c.l.b16 %v539
        %v608 = vunpack.c.l.b16 %v540
        %v609 = vunpack.c.l.b16 %v541
        %v610 = vunpack.c.l.b16 %v542
        %v611 = vunpack.c.l.b16 %v543
        %v612 = vunpack.c.l.b16 %v544
        %v613 = vunpack.c.l.b16 %v545
        %v614 = vunpack.c.l.b16 %v546
        %v615 = vunpack.c.l.b16 %v547
        %v616 = vunpack.c.l.b16 %v548
        %v617 = vunpack.c.l.b16 %v549
        %v618 = vunpack.c.l.b16 %v550
        %v619 = vunpack.c.l.b16 %v551
        %v620 = vunpack.c.l.b16 %v552
        %v621 = vunpack.c.l.b16 %v553
        %v622 = vunpack.c.l.b16 %v554
        %v623 = vunpack.c.l.b16 %v555
        %v624 = vunpack.c.l.b16 %v556
        %v625 = vunpack.c.l.b16 %v557
        %v626 = vunpack.c.l.b16 %v558
        %v627 = vunpack.c.l.b16 %v559
        %v628 = vpack.c.b16 %v597, %v596
        %v629 = vpack.c.b16 %v599, %v598
        %v630 = vpack.c.b16 %v601, %v600
        %v631 = vpack.c.b16 %v603, %v602
        %v632 = vpack.c.b16 %v605, %v604
        %v633 = vpack.c.b16 %v607, %v606
        %v634 = vpack.c.b16 %v609, %v608
        %v635 = vpack.c.b16 %v611, %v610
        %v636 = vpack.c.b16 %v613, %v612
        %v637 = vpack.c.b16 %v615, %v614
        %v638 = vpack.c.b16 %v617, %v616
        %v639 = vpack.c.b16 %v619, %v618
        %v640 = vpack.c.b16 %v621, %v620
        %v641 = vpack.c.b16 %v623, %v622
        %v642 = vpack.c.b16 %v625, %v624
        %v643 = vpack.c.b16 %v627, %v626
        %660 = vmatpush.bf16.msra.mxu0 %v635
        %661 = vmatpush.bf16.msra.mxu0 %v634
        %662 = vmatpush.bf16.msra.mxu0 %v633
        %663 = vmatpush.bf16.msra.mxu0 %v632
        %664 = vmatpush.bf16.msra.mxu0 %v631
        %665 = vmatpush.bf16.msra.mxu0 %v630
        %666 = vmatpush.bf16.msra.mxu0 %v629
        %667 = vmatpush.bf16.msra.mxu0 %v628
        %668 = vmatmul.bf16.gmra.mxu0 %v512
        %v669 = vpop.f32.mrf.mxu0
        %v670 = vadd.f32 %v562, %v669
        %v671 = vpop.f32.mrf.mxu0
        %v672 = vadd.f32 %v562, %v671
        %673 = vmatmul.bf16.gmra.mxu0 %v514
        %v674 = vpop.f32.mrf.mxu0
        %v675 = vadd.f32 %v562, %v674
        %v676 = vpop.f32.mrf.mxu0
        %v677 = vadd.f32 %v562, %v676
        %678 = vmatmul.bf16.gmra.mxu0 %v516
        %v679 = vpop.f32.mrf.mxu0
        %v680 = vadd.f32 %v562, %v679
        %v681 = vpop.f32.mrf.mxu0
        %v682 = vadd.f32 %v562, %v681
        %683 = vmatmul.bf16.gmra.mxu0 %v518
        %v684 = vpop.f32.mrf.mxu0
        %v685 = vadd.f32 %v562, %v684
        %v686 = vpop.f32.mrf.mxu0
        %v687 = vadd.f32 %v562, %v686
        %688 = vmatmul.bf16.gmra.mxu0 %v520
        %v689 = vpop.f32.mrf.mxu0
        %v690 = vadd.f32 %v562, %v689
        %v691 = vpop.f32.mrf.mxu0
        %v692 = vadd.f32 %v562, %v691
        %693 = vmatmul.bf16.gmra.mxu0 %v522
        %v694 = vpop.f32.mrf.mxu0
        %v695 = vadd.f32 %v562, %v694
        %v696 = vpop.f32.mrf.mxu0
        %v697 = vadd.f32 %v562, %v696
        %698 = vmatmul.bf16.gmra.mxu0 %v524
        %v699 = vpop.f32.mrf.mxu0
        %v700 = vadd.f32 %v562, %v699
        %v701 = vpop.f32.mrf.mxu0
        %v702 = vadd.f32 %v562, %v701
        %703 = vmatmul.bf16.gmra.mxu0 %v526
        %v704 = vpop.f32.mrf.mxu0
        %v705 = vadd.f32 %v562, %v704
        %v706 = vpop.f32.mrf.mxu0
        %v707 = vadd.f32 %v562, %v706
        %708 = vdwg.mxu0
        %709 = vmatpush.bf16.msra.mxu0 %v643
        %710 = vmatpush.bf16.msra.mxu0 %v642
        %711 = vmatpush.bf16.msra.mxu0 %v641
        %712 = vmatpush.bf16.msra.mxu0 %v640
        %713 = vmatpush.bf16.msra.mxu0 %v639
        %714 = vmatpush.bf16.msra.mxu0 %v638
        %715 = vmatpush.bf16.msra.mxu0 %v637
        %716 = vmatpush.bf16.msra.mxu0 %v636
        %717 = vmatmul.bf16.gmra.mxu0 %v513
        %v718 = vpop.f32.mrf.mxu0
        %v719 = vadd.f32 %v670, %v718
        %v720 = vpop.f32.mrf.mxu0
        %v721 = vadd.f32 %v672, %v720
        %722 = vmatmul.bf16.gmra.mxu0 %v515
        %v723 = vpop.f32.mrf.mxu0
        %v724 = vadd.f32 %v675, %v723
        %v725 = vpop.f32.mrf.mxu0
        %v726 = vadd.f32 %v677, %v725
        %727 = vmatmul.bf16.gmra.mxu0 %v517
        %v728 = vpop.f32.mrf.mxu0
        %v729 = vadd.f32 %v680, %v728
        %v730 = vpop.f32.mrf.mxu0
        %v731 = vadd.f32 %v682, %v730
        %732 = vmatmul.bf16.gmra.mxu0 %v519
        %v733 = vpop.f32.mrf.mxu0
        %v734 = vadd.f32 %v685, %v733
        %v735 = vpop.f32.mrf.mxu0
        %v736 = vadd.f32 %v687, %v735
        %737 = vmatmul.bf16.gmra.mxu0 %v521
        %v738 = vpop.f32.mrf.mxu0
        %v739 = vadd.f32 %v690, %v738
        %v740 = vpop.f32.mrf.mxu0
        %v741 = vadd.f32 %v692, %v740
        %742 = vmatmul.bf16.gmra.mxu0 %v523
        %v743 = vpop.f32.mrf.mxu0
        %v744 = vadd.f32 %v695, %v743
        %v745 = vpop.f32.mrf.mxu0
        %v746 = vadd.f32 %v697, %v745
        %747 = vmatmul.bf16.gmra.mxu0 %v525
        %v748 = vpop.f32.mrf.mxu0
        %v749 = vadd.f32 %v700, %v748
        %v750 = vpop.f32.mrf.mxu0
        %v751 = vadd.f32 %v702, %v750
        %752 = vmatmul.bf16.gmra.mxu0 %v527
        %v753 = vpop.f32.mrf.mxu0
        %v754 = vadd.f32 %v705, %v753
        %v755 = vpop.f32.mrf.mxu0
        %v756 = vadd.f32 %v707, %v755
        %757 = vdwg.mxu0
        %v758 = vmax.f32 %v719, 0.0
        %v759 = vmax.f32 %v721, 0.0
        %v760 = vmax.f32 %v724, 0.0
        %v761 = vmax.f32 %v726, 0.0
        %v762 = vmax.f32 %v729, 0.0
        %v763 = vmax.f32 %v731, 0.0
        %v764 = vmax.f32 %v734, 0.0
        %v765 = vmax.f32 %v736, 0.0
        %v766 = vmax.f32 %v739, 0.0
        %v767 = vmax.f32 %v741, 0.0
        %v768 = vmax.f32 %v744, 0.0
        %v769 = vmax.f32 %v746, 0.0
        %v770 = vmax.f32 %v749, 0.0
        %v771 = vmax.f32 %v751, 0.0
        %v772 = vmax.f32 %v754, 0.0
        %v773 = vmax.f32 %v756, 0.0
        %v774 = vld [vmem:[%s5] sm:$0x1]
        %v776 = vperm.slane %v774, 0
        %v778 = vmul.f32 %v758, %v776
        %v779 = vmul.f32 %v759, %v776
        %v780 = vmul.f32 %v760, %v776
        %v781 = vmul.f32 %v761, %v776
        %v782 = vmul.f32 %v762, %v776
        %v783 = vmul.f32 %v763, %v776
        %v784 = vmul.f32 %v764, %v776
        %v785 = vmul.f32 %v765, %v776
        %v786 = vmul.f32 %v766, %v776
        %v787 = vmul.f32 %v767, %v776
        %v788 = vmul.f32 %v768, %v776
        %v789 = vmul.f32 %v769, %v776
        %v790 = vmul.f32 %v770, %v776
        %v791 = vmul.f32 %v771, %v776
        %v792 = vmul.f32 %v772, %v776
        %v793 = vmul.f32 %v773, %v776
        %vm794 = vcmask 523264
        %v795 = vsel %vm794, %v778, 0.0
        %796 = vadd.xlane.f32.xlu0 %v795
        %v797 = vpop.xlane.xlu0 %796
        %v798 = vsel %vm794, %v779, 0.0
        %799 = vadd.xlane.f32.xlu0 %v798
        %v800 = vpop.xlane.xlu0 %799
        %v801 = vsel %vm794, %v780, 0.0
        %802 = vadd.xlane.f32.xlu0 %v801
        %v803 = vpop.xlane.xlu0 %802
        %v804 = vsel %vm794, %v781, 0.0
        %805 = vadd.xlane.f32.xlu0 %v804
        %v806 = vpop.xlane.xlu0 %805
        %v807 = vsel %vm794, %v782, 0.0
        %808 = vadd.xlane.f32.xlu0 %v807
        %v809 = vpop.xlane.xlu0 %808
        %v810 = vsel %vm794, %v783, 0.0
        %811 = vadd.xlane.f32.xlu0 %v810
        %v812 = vpop.xlane.xlu0 %811
        %v813 = vsel %vm794, %v784, 0.0
        %814 = vadd.xlane.f32.xlu0 %v813
        %v815 = vpop.xlane.xlu0 %814
        %v816 = vsel %vm794, %v785, 0.0
        %817 = vadd.xlane.f32.xlu0 %v816
        %v818 = vpop.xlane.xlu0 %817
        %v819 = vsel %vm794, %v786, 0.0
        %820 = vadd.xlane.f32.xlu0 %v819
        %v821 = vpop.xlane.xlu0 %820
        %v822 = vsel %vm794, %v787, 0.0
        %823 = vadd.xlane.f32.xlu0 %v822
        %v824 = vpop.xlane.xlu0 %823
        %v825 = vsel %vm794, %v788, 0.0
        %826 = vadd.xlane.f32.xlu0 %v825
        %v827 = vpop.xlane.xlu0 %826
        %v828 = vsel %vm794, %v789, 0.0
        %829 = vadd.xlane.f32.xlu0 %v828
        %v830 = vpop.xlane.xlu0 %829
        %v831 = vsel %vm794, %v790, 0.0
        %832 = vadd.xlane.f32.xlu0 %v831
        %v833 = vpop.xlane.xlu0 %832
        %v834 = vsel %vm794, %v791, 0.0
        %835 = vadd.xlane.f32.xlu0 %v834
        %v836 = vpop.xlane.xlu0 %835
        %v837 = vsel %vm794, %v792, 0.0
        %838 = vadd.xlane.f32.xlu0 %v837
        %v839 = vpop.xlane.xlu0 %838
        %v840 = vsel %vm794, %v793, 0.0
        %841 = vadd.xlane.f32.xlu0 %v840
        %v842 = vpop.xlane.xlu0 %841
        %v843 = vld [vmem:[#allocation2] sm:$0x1]
        %v845 = vperm.slane %v843, 0
        %v847 = vadd.f32 %v797, %v845
        %v848 = vadd.f32 %v800, %v845
        %v849 = vadd.f32 %v803, %v845
        %v850 = vadd.f32 %v806, %v845
        %v851 = vadd.f32 %v809, %v845
        %v852 = vadd.f32 %v812, %v845
        %v853 = vadd.f32 %v815, %v845
        %v854 = vadd.f32 %v818, %v845
        %v855 = vadd.f32 %v821, %v845
        %v856 = vadd.f32 %v824, %v845
        %v857 = vadd.f32 %v827, %v845
        %v858 = vadd.f32 %v830, %v845
        %v859 = vadd.f32 %v833, %v845
        %v860 = vadd.f32 %v836, %v845
        %v861 = vadd.f32 %v839, %v845
        %v862 = vadd.f32 %v842, %v845
        %vm863 = vcmask 7168
        %864 = vst.msk [vmem:[%s282] sm:$0xff] %vm863, %v847
        %865 = vst.msk [vmem:[%s282 + $0x8] sm:$0xff] %vm863, %v848
        %866 = vst.msk [vmem:[%s282 + $0x10] sm:$0xff] %vm863, %v849
        %867 = vst.msk [vmem:[%s282 + $0x18] sm:$0xff] %vm863, %v850
        %868 = vst.msk [vmem:[%s282 + $0x20] sm:$0xff] %vm863, %v851
        %869 = vst.msk [vmem:[%s282 + $0x28] sm:$0xff] %vm863, %v852
        %870 = vst.msk [vmem:[%s282 + $0x30] sm:$0xff] %vm863, %v853
        %871 = vst.msk [vmem:[%s282 + $0x38] sm:$0xff] %vm863, %v854
        %872 = vst.msk [vmem:[%s282 + $0x40] sm:$0xff] %vm863, %v855
        %873 = vst.msk [vmem:[%s282 + $0x48] sm:$0xff] %vm863, %v856
        %874 = vst.msk [vmem:[%s282 + $0x50] sm:$0xff] %vm863, %v857
        %875 = vst.msk [vmem:[%s282 + $0x58] sm:$0xff] %vm863, %v858
        %876 = vst.msk [vmem:[%s282 + $0x60] sm:$0xff] %vm863, %v859
        %877 = vst.msk [vmem:[%s282 + $0x68] sm:$0xff] %vm863, %v860
        %878 = vst.msk [vmem:[%s282 + $0x70] sm:$0xff] %vm863, %v861
        %879 = vst.msk [vmem:[%s282 + $0x78] sm:$0xff] %vm863, %v862
        %s880 = sand.u32 %s180, 1
        %s881 = sand.u32 %s180, 1
        %s882 = smul.addr %s881, 128
        %s883 = scalar_lea.vmem [#allocation3], %s882
        // Predicated region
        $region49: #{distress_classifier_forward.1} parent=47 // pred_check
          %p884 = pneg %p190
        $region50: #{distress_classifier_forward.1} parent=47 // pred_check_branch
          %886 = sbr.rel (%p884) target = $region52
        $region51: #{distress_classifier_forward.1} parent=47 // pred_region
          %s887 = smul.u32 16, %s20
          %s888 = ssub.s32 25, %s887
          %p889 = scmp.lt.s32.totalorder %s888, 16
          %s890 = scalar_select %p889, %s888, 16
          %s891 = smul.u32 8, %s890
          %p892 = scmp.ne.s32.totalorder 0, %s891
          %s893 = smul.addr %s887, 8
          %s894 = scalar_lea.vmem %s7, %s893
          // Predicated region
          $region53: #{distress_classifier_forward.1} parent=51 // pred_check
            %p895 = pneg %p892
          $region54: #{distress_classifier_forward.1} parent=51 // pred_check_branch
            %897 = sbr.rel (%p895) target = $region56
          $region55: #{distress_classifier_forward.1} parent=51 // pred_region
            // Predicated region
            $region57: #{distress_classifier_forward.1} parent=55 // pred_check
              _
            $region58: #{distress_classifier_forward.1} parent=55 // pred_check_branch
              %899 = sbr.rel (0) target = $region60
            $region59: #{distress_classifier_forward.1} parent=55 // pred_region
              // Predicated region
              $region79: #{distress_classifier_forward.1} parent=59 // pred_check
                _
              $region80: #{distress_classifier_forward.1} parent=59 // pred_check_branch
                %979 = sbr.rel (0) target = $region82
              $region81: #{distress_classifier_forward.1} parent=59 // pred_region
                %s980 = sshrl.u32 %s890, 4
                // While loop
                $region83: #{distress_classifier_forward.1} parent=81 // loop_pre_header
                  _
                $region84: #{distress_classifier_forward.1} parent=81 // loop_header
                  %s982 = sphi 0, %s984
                  %p983 = scmp.ge.s32.totalorder %s982, %s980
                  %s987 = sphi 0, %s1024
                  %s988 = sphi %s883, %s1027
                  %s989 = sphi %s894, %s1028
                $region85: #{distress_classifier_forward.1} parent=81 // loop_header_branch
                  %986 = sbr.rel (%p983) target = $region89
                $region86: #{distress_classifier_forward.1} parent=81 // loop_body
                  %v990 = vld [vmem:[%s988] sm:$0xff]
                  %991 = vst [vmem:[%s989] sm:$0xff] %v990
                  %v992 = vld [vmem:[%s988 + $0x8] sm:$0xff]
                  %993 = vst [vmem:[%s989 + $0x8] sm:$0xff] %v992
                  %v994 = vld [vmem:[%s988 + $0x10] sm:$0xff]
                  %995 = vst [vmem:[%s989 + $0x10] sm:$0xff] %v994
                  %v996 = vld [vmem:[%s988 + $0x18] sm:$0xff]
                  %997 = vst [vmem:[%s989 + $0x18] sm:$0xff] %v996
                  %v998 = vld [vmem:[%s988 + $0x20] sm:$0xff]
                  %999 = vst [vmem:[%s989 + $0x20] sm:$0xff] %v998
                  %v1000 = vld [vmem:[%s988 + $0x28] sm:$0xff]
                  %1001 = vst [vmem:[%s989 + $0x28] sm:$0xff] %v1000
                  %v1002 = vld [vmem:[%s988 + $0x30] sm:$0xff]
                  %1003 = vst [vmem:[%s989 + $0x30] sm:$0xff] %v1002
                  %v1004 = vld [vmem:[%s988 + $0x38] sm:$0xff]
                  %1005 = vst [vmem:[%s989 + $0x38] sm:$0xff] %v1004
                  %v1006 = vld [vmem:[%s988 + $0x40] sm:$0xff]
                  %1007 = vst [vmem:[%s989 + $0x40] sm:$0xff] %v1006
                  %v1008 = vld [vmem:[%s988 + $0x48] sm:$0xff]
                  %1009 = vst [vmem:[%s989 + $0x48] sm:$0xff] %v1008
                  %v1010 = vld [vmem:[%s988 + $0x50] sm:$0xff]
                  %1011 = vst [vmem:[%s989 + $0x50] sm:$0xff] %v1010
                  %v1012 = vld [vmem:[%s988 + $0x58] sm:$0xff]
                  %1013 = vst [vmem:[%s989 + $0x58] sm:$0xff] %v1012
                  %v1014 = vld [vmem:[%s988 + $0x60] sm:$0xff]
                  %1015 = vst [vmem:[%s989 + $0x60] sm:$0xff] %v1014
                  %v1016 = vld [vmem:[%s988 + $0x68] sm:$0xff]
                  %1017 = vst [vmem:[%s989 + $0x68] sm:$0xff] %v1016
                  %v1018 = vld [vmem:[%s988 + $0x70] sm:$0xff]
                  %1019 = vst [vmem:[%s989 + $0x70] sm:$0xff] %v1018
                  %v1020 = vld [vmem:[%s988 + $0x78] sm:$0xff]
                  %1021 = vst [vmem:[%s989 + $0x78] sm:$0xff] %v1020
                  %s1022 = sadd.s32 1, %s987
                  %p1023 = scmp.ge.s32.totalorder %s1022, %s980
                  %s1024 = scalar_select %p1023, 0, %s1022
                  %s1025 = smul.u32 %s1024, 128
                  %s1026 = smul.u32 %s1024, 128
                  %s1027 = scalar_lea.vmem %s883, %s1025 [#allocation3]
                  %s1028 = scalar_lea.vmem %s894, %s1026
                $region87: #{distress_classifier_forward.1} parent=81 // loop_footer
                  %s984 = sadd.s32 %s982, 1
                $region88: #{distress_classifier_forward.1} parent=81 // loop_footer_branch
                  %981 = sbr.rel target = $region84
                $region89: #{distress_classifier_forward.1} parent=81 // loop_exit
                  _
                %s1029 = sshrl.u32 %s890, 4
                %s1030 = sand.u32 %s890, 15
                %s1031 = smul.u32 %s1029, 16
                %s1032 = smul.u32 8, %s1031
                %s1033 = scalar_lea.vmem %s883, %s1032 [#allocation3]
                %s1034 = smul.u32 8, %s1031
                %s1035 = scalar_lea.vmem %s894, %s1034
                // While loop
                $region90: #{distress_classifier_forward.1} parent=81 // loop_pre_header
                  _
                $region91: #{distress_classifier_forward.1} parent=81 // loop_header
                  %s1037 = sphi 0, %s1039
                  %p1038 = scmp.ge.s32.totalorder %s1037, %s1030
                  %s1042 = sphi 0, %s1049
                  %s1043 = sphi %s1033, %s1052
                  %s1044 = sphi %s1035, %s1053
                $region92: #{distress_classifier_forward.1} parent=81 // loop_header_branch
                  %1041 = sbr.rel (%p1038) target = $region96
                $region93: #{distress_classifier_forward.1} parent=81 // loop_body
                  %v1045 = vld [vmem:[%s1043] sm:$0xff]
                  %1046 = vst [vmem:[%s1044] sm:$0xff] %v1045
                  %s1047 = sadd.s32 1, %s1042
                  %p1048 = scmp.ge.s32.totalorder %s1047, %s1030
                  %s1049 = scalar_select %p1048, 0, %s1047
                  %s1050 = smul.u32 %s1049, 8
                  %s1051 = smul.u32 %s1049, 8
                  %s1052 = scalar_lea.vmem %s1033, %s1050 [#allocation3]
                  %s1053 = scalar_lea.vmem %s1035, %s1051
                $region94: #{distress_classifier_forward.1} parent=81 // loop_footer
                  %s1039 = sadd.s32 %s1037, 1
                $region95: #{distress_classifier_forward.1} parent=81 // loop_footer_branch
                  %1036 = sbr.rel target = $region91
                $region96: #{distress_classifier_forward.1} parent=81 // loop_exit
                  _
              $region82: #{distress_classifier_forward.1} parent=59 // pred_fallthru
                _
              // Predicated region
              $region97: #{distress_classifier_forward.1} parent=59 // pred_check
                _
              $region98: #{distress_classifier_forward.1} parent=59 // pred_check_branch
                %1055 = sbr.rel target = $region100
              $region99: #{distress_classifier_forward.1} parent=59 // pred_region
                _
              $region100: #{distress_classifier_forward.1} parent=59 // pred_fallthru
                _
            $region60: #{distress_classifier_forward.1} parent=55 // pred_fallthru
              _
            // Predicated region
            $region61: #{distress_classifier_forward.1} parent=55 // pred_check
              _
            $region62: #{distress_classifier_forward.1} parent=55 // pred_check_branch
              %901 = sbr.rel target = $region64
            $region63: #{distress_classifier_forward.1} parent=55 // pred_region
              %s903 = ssub.s32 256, 1
              %s904 = sshrl.u32 %s890, 4
              // While loop
              $region65: #{distress_classifier_forward.1} parent=63 // loop_pre_header
                _
              $region66: #{distress_classifier_forward.1} parent=63 // loop_header
                %s906 = sphi 0, %s908
                %p907 = scmp.ge.s32.totalorder %s906, %s904
                %s911 = sphi 0, %s948
                %s912 = sphi %s883, %s951
                %s913 = sphi %s894, %s952
              $region67: #{distress_classifier_forward.1} parent=63 // loop_header_branch
                %910 = sbr.rel (%p907) target = $region71
              $region68: #{distress_classifier_forward.1} parent=63 // loop_body
                %v914 = vld [vmem:[%s912] sm:%s903]
                %915 = vst [vmem:[%s913] sm:%s903] %v914
                %v916 = vld [vmem:[%s912 + $0x8] sm:%s903]
                %917 = vst [vmem:[%s913 + $0x8] sm:%s903] %v916
                %v918 = vld [vmem:[%s912 + $0x10] sm:%s903]
                %919 = vst [vmem:[%s913 + $0x10] sm:%s903] %v918
                %v920 = vld [vmem:[%s912 + $0x18] sm:%s903]
                %921 = vst [vmem:[%s913 + $0x18] sm:%s903] %v920
                %v922 = vld [vmem:[%s912 + $0x20] sm:%s903]
                %923 = vst [vmem:[%s913 + $0x20] sm:%s903] %v922
                %v924 = vld [vmem:[%s912 + $0x28] sm:%s903]
                %925 = vst [vmem:[%s913 + $0x28] sm:%s903] %v924
                %v926 = vld [vmem:[%s912 + $0x30] sm:%s903]
                %927 = vst [vmem:[%s913 + $0x30] sm:%s903] %v926
                %v928 = vld [vmem:[%s912 + $0x38] sm:%s903]
                %929 = vst [vmem:[%s913 + $0x38] sm:%s903] %v928
                %v930 = vld [vmem:[%s912 + $0x40] sm:%s903]
                %931 = vst [vmem:[%s913 + $0x40] sm:%s903] %v930
                %v932 = vld [vmem:[%s912 + $0x48] sm:%s903]
                %933 = vst [vmem:[%s913 + $0x48] sm:%s903] %v932
                %v934 = vld [vmem:[%s912 + $0x50] sm:%s903]
                %935 = vst [vmem:[%s913 + $0x50] sm:%s903] %v934
                %v936 = vld [vmem:[%s912 + $0x58] sm:%s903]
                %937 = vst [vmem:[%s913 + $0x58] sm:%s903] %v936
                %v938 = vld [vmem:[%s912 + $0x60] sm:%s903]
                %939 = vst [vmem:[%s913 + $0x60] sm:%s903] %v938
                %v940 = vld [vmem:[%s912 + $0x68] sm:%s903]
                %941 = vst [vmem:[%s913 + $0x68] sm:%s903] %v940
                %v942 = vld [vmem:[%s912 + $0x70] sm:%s903]
                %943 = vst [vmem:[%s913 + $0x70] sm:%s903] %v942
                %v944 = vld [vmem:[%s912 + $0x78] sm:%s903]
                %945 = vst [vmem:[%s913 + $0x78] sm:%s903] %v944
                %s946 = sadd.s32 1, %s911
                %p947 = scmp.ge.s32.totalorder %s946, %s904
                %s948 = scalar_select %p947, 0, %s946
                %s949 = smul.u32 %s948, 128
                %s950 = smul.u32 %s948, 128
                %s951 = scalar_lea.vmem %s883, %s949 [#allocation3]
                %s952 = scalar_lea.vmem %s894, %s950
              $region69: #{distress_classifier_forward.1} parent=63 // loop_footer
                %s908 = sadd.s32 %s906, 1
              $region70: #{distress_classifier_forward.1} parent=63 // loop_footer_branch
                %905 = sbr.rel target = $region66
              $region71: #{distress_classifier_forward.1} parent=63 // loop_exit
                _
              %s953 = sshrl.u32 %s890, 4
              %s954 = sand.u32 %s890, 15
              %s955 = smul.u32 %s953, 16
              %s956 = smul.u32 8, %s955
              %s957 = scalar_lea.vmem %s883, %s956 [#allocation3]
              %s958 = smul.u32 8, %s955
              %s959 = scalar_lea.vmem %s894, %s958
              // While loop
              $region72: #{distress_classifier_forward.1} parent=63 // loop_pre_header
                _
              $region73: #{distress_classifier_forward.1} parent=63 // loop_header
                %s961 = sphi 0, %s963
                %p962 = scmp.ge.s32.totalorder %s961, %s954
                %s966 = sphi 0, %s973
                %s967 = sphi %s957, %s976
                %s968 = sphi %s959, %s977
              $region74: #{distress_classifier_forward.1} parent=63 // loop_header_branch
                %965 = sbr.rel (%p962) target = $region78
              $region75: #{distress_classifier_forward.1} parent=63 // loop_body
                %v969 = vld [vmem:[%s967] sm:%s903]
                %970 = vst [vmem:[%s968] sm:%s903] %v969
                %s971 = sadd.s32 1, %s966
                %p972 = scmp.ge.s32.totalorder %s971, %s954
                %s973 = scalar_select %p972, 0, %s971
                %s974 = smul.u32 %s973, 8
                %s975 = smul.u32 %s973, 8
                %s976 = scalar_lea.vmem %s957, %s974 [#allocation3]
                %s977 = scalar_lea.vmem %s959, %s975
              $region76: #{distress_classifier_forward.1} parent=63 // loop_footer
                %s963 = sadd.s32 %s961, 1
              $region77: #{distress_classifier_forward.1} parent=63 // loop_footer_branch
                %960 = sbr.rel target = $region73
              $region78: #{distress_classifier_forward.1} parent=63 // loop_exit
                _
            $region64: #{distress_classifier_forward.1} parent=55 // pred_fallthru
              _
          $region56: #{distress_classifier_forward.1} parent=51 // pred_fallthru
            _
          %1056 = vnop
        $region52: #{distress_classifier_forward.1} parent=47 // pred_fallthru
          _
      $region48: #{distress_classifier_forward.1} parent=5 // pred_fallthru
        _
      %p1057 = scmp.le.s32.totalorder 2, %s15
      // Predicated region
      $region101: #{distress_classifier_forward.1} parent=5 // pred_check
        %p1058 = pneg %p1057
      $region102: #{distress_classifier_forward.1} parent=5 // pred_check_branch
        %1060 = sbr.rel (%p1058) target = $region104
      $region103: #{distress_classifier_forward.1} parent=5 // pred_region
        %s1061 = ssub.s32 %s15, 2
        // Predicated region
        $region105: #{distress_classifier_forward.1} parent=103 // pred_check
          %p1062 = pneg %p196
        $region106: #{distress_classifier_forward.1} parent=103 // pred_check_branch
          %1064 = sbr.rel (%p1062) target = $region108
        $region107: #{distress_classifier_forward.1} parent=103 // pred_region
          %s1065 = sand.u32 %s181, 1
          %s1066 = sand.u32 %s181, 1
          %s1067 = smul.addr %s1066, 128
          %s1068 = scalar_lea.vmem [#allocation3], %s1067
        $region108: #{distress_classifier_forward.1} parent=103 // pred_fallthru
          _
      $region104: #{distress_classifier_forward.1} parent=5 // pred_fallthru
        _
    $region6: #{distress_classifier_forward.1} parent=1 // loop_footer
      %s19 = sadd.s32 1, %s15
    $region7: #{distress_classifier_forward.1} parent=1 // loop_footer_branch
      %14 = sbr.rel target = $region3
    $region8: #{distress_classifier_forward.1} parent=1 // loop_exit
      _

</llo_original>
